<compile_context>
chip_gen: v7x
topology: tpu7x:2x2x1
jax: 0.10.0
libtpu: 0.0.40
codegen_flags: <defaults>
</compile_context>

<pallas_src>
import jax
import jax.numpy as jnp
from jax.experimental import pallas as pl
from jax.experimental.pallas import tpu as pltpu

H = 768            # hidden size hard-coded in BertFinetun (proj_t / dense / LayerNorm1)
PROJ = 30          # conv1d output channels
PROJ_PAD = 128     # lane-padded projection width (zero-filled columns)
LN_EPS = 1e-12


def _compiler_params():
  return pltpu.CompilerParams(
      dimension_semantics=("parallel",),
      vmem_limit_bytes=64 * 1024 * 1024)


def proj_kernel(hid_ref, audio_ref, wt_ref, wa_ref, td_ref, ad_ref, ssq_ref):
  """Per-batch conv1d(k=1) projections (bf16 MXU, f32 acc) + partial sum(td^2)."""
  hid = hid_ref[0].astype(jnp.bfloat16)      # (S, H)
  aud = audio_ref[0].astype(jnp.bfloat16)    # (S, A)
  td = jnp.dot(hid, wt_ref[...], preferred_element_type=jnp.float32)   # (S, 128)
  ad = jnp.dot(aud, wa_ref[...], preferred_element_type=jnp.float32)   # (S, 128)
  td_ref[0] = td.astype(jnp.bfloat16)
  ad_ref[0] = ad.astype(jnp.bfloat16)
  # Padded columns are exactly zero, so this equals the sum over the 30 real cols.
  ssq = jnp.sum(td * td, axis=1, keepdims=True)        # (S, 1)
  ssq_ref[0] = jnp.sum(ssq, axis=0, keepdims=True)     # (1, 1)


def fusion_kernel(td_ref, ad_ref, hid_ref, mrow_ref, mcol_ref,
                  dense_w_ref, dense_b_ref, ln_w_ref, ln_b_ref,
                  cls_w_ref, cls_b_ref, scal_ref,
                  logits_ref, text_att_ref, fusion_att_ref):
  td = td_ref[0]          # (S, 128) bf16 (raw, un-normalized projection)
  ad = ad_ref[0]          # (S, 128) bf16
  hid = hid_ref[0]        # (S, H)   f32

  # Self-similarity attentions on the raw projections (bf16 MXU, f32 acc);
  # the global L2-norm scale is folded in afterwards (inv_w2 below).
  dims = (((1,), (1,)), ((), ()))
  text_raw = jax.lax.dot_general(td, td, dims, preferred_element_type=jnp.float32)
  audio_raw = jax.lax.dot_general(ad, ad, dims, preferred_element_type=jnp.float32)

  tw = scal_ref[0]
  aw = scal_ref[1]
  fb = scal_ref[2]
  inv_w2 = scal_ref[3]    # 1 / weights^2 == rsqrt(sum td^2)  (no eps, matches reference)

  text_att1 = jnp.maximum(text_raw, 0.0) * inv_w2       # relu((td/w) @ (td/w).T)
  audio_att1 = jnp.maximum(audio_raw, 0.0)
  text_att_ref[0] = text_att1                           # store early (free VMEM/vregs)

  fusion_att = tw * text_att1 + aw * audio_att1 + fb
  fusion_att_ref[0] = jnp.maximum(fusion_att, 0.0)      # store early

  # Masked softmax consumes the PRE-ReLU fusion_att (matches the reference).
  logits_att = fusion_att + mrow_ref[0] + mcol_ref[0]   # (S,S)+(1,S)+(S,1)
  m = jnp.max(logits_att, axis=-1, keepdims=True)
  e = jnp.exp(logits_att - m)
  att = e * pl.reciprocal(jnp.sum(e, axis=-1, keepdims=True), approx=True)
  # dropout1: identity (inference)

  # fusion_data = att @ hidden_states + hidden_states
  hid_b = hid.astype(jnp.bfloat16)
  fusion_data = jnp.dot(att.astype(jnp.bfloat16), hid_b,
                        preferred_element_type=jnp.float32) + hid

  # dense(768, 768) + bias, dropout identity, TF-style LayerNorm (f32 math).
  new = jnp.dot(fusion_data.astype(jnp.bfloat16), dense_w_ref[...],
                preferred_element_type=jnp.float32) + dense_b_ref[...]
  u = jnp.mean(new, axis=-1, keepdims=True)
  s = jnp.mean(jnp.square(new - u), axis=-1, keepdims=True)
  new = (new - u) * jax.lax.rsqrt(s + LN_EPS)
  new = ln_w_ref[...] * new + ln_b_ref[...]

  # pooled = hidden_states_new[:, 0]; classifier Linear(768, 1) as mul + lane reduce.
  pooled = new[0:1, :]                                              # (1, H)
  logits_ref[0] = (jnp.sum(pooled * cls_w_ref[...], axis=-1, keepdims=True)
                   + cls_b_ref[...])                                # (1, 1)


def run_finetune_classifier(hidden, audio, ext_mask, params):
  B, S, Hh = hidden.shape
  A = audio.shape[-1]
  f32 = jnp.float32

  # Pad conv1d(k=1) weights on the lane axis 30 -> 128 (zero columns contribute 0)
  # and cast big matmul weights to bf16 (f32 accumulation inside the kernels).
  wt_pad = jnp.zeros((Hh, PROJ_PAD), f32).at[:, :PROJ].set(params['wt'])
  wa_pad = jnp.zeros((A, PROJ_PAD), f32).at[:, :PROJ].set(params['wa'])
  wt_pad = wt_pad.astype(jnp.bfloat16)
  wa_pad = wa_pad.astype(jnp.bfloat16)
  dense_w = params['dense_w'].astype(jnp.bfloat16)

  cp = _compiler_params()

  # --- kernel A: projections + per-batch partial sum of squares -------------
  td, ad, ssq = pl.pallas_call(
      proj_kernel,
      grid=(B,),
      in_specs=[
          pl.BlockSpec((1, S, Hh), lambda b: (b, 0, 0)),         # hidden
          pl.BlockSpec((1, S, A), lambda b: (b, 0, 0)),          # audio
          pl.BlockSpec((Hh, PROJ_PAD), lambda b: (0, 0)),        # wt (resident)
          pl.BlockSpec((A, PROJ_PAD), lambda b: (0, 0)),         # wa (resident)
      ],
      out_specs=(
          pl.BlockSpec((1, S, PROJ_PAD), lambda b: (b, 0, 0)),   # td
          pl.BlockSpec((1, S, PROJ_PAD), lambda b: (b, 0, 0)),   # ad
          pl.BlockSpec((1, 1, 1), lambda b: (b, 0, 0)),          # partial sum(td^2)
      ),
      out_shape=(
          jax.ShapeDtypeStruct((B, S, PROJ_PAD), jnp.bfloat16),
          jax.ShapeDtypeStruct((B, S, PROJ_PAD), jnp.bfloat16),
          jax.ShapeDtypeStruct((B, 1, 1), f32),
      ),
      compiler_params=cp,
  )(hidden, audio, wt_pad, wa_pad)

  # weights = sqrt(||flatten(text_data)||_2)  =>  1/weights^2 = rsqrt(sum td^2).
  # Glue: a B-element reduction + scalar rsqrt between the two kernels; the
  # scale itself is applied post-matmul inside the fusion kernel.
  inv_w2 = jax.lax.rsqrt(jnp.sum(ssq))
  scalars = jnp.stack([params['text_w'], params['audio_w'],
                       params['fusion_b'], inv_w2]).astype(f32)     # (4,) SMEM

  smem = pl.BlockSpec(memory_space=pltpu.MemorySpace.SMEM)

  # --- kernel B: fusion attention + dense + LayerNorm + classifier ----------
  logits, text_att, fusion_att = pl.pallas_call(
      fusion_kernel,
      grid=(B,),
      in_specs=[
          pl.BlockSpec((1, S, PROJ_PAD), lambda b: (b, 0, 0)),   # td
          pl.BlockSpec((1, S, PROJ_PAD), lambda b: (b, 0, 0)),   # ad
          pl.BlockSpec((1, S, Hh), lambda b: (b, 0, 0)),         # hidden
          pl.BlockSpec((1, 1, S), lambda b: (b, 0, 0)),          # mask (row bias)
          pl.BlockSpec((1, S, 1), lambda b: (b, 0, 0)),          # mask (col bias)
          pl.BlockSpec((Hh, Hh), lambda b: (0, 0)),              # dense_w (bf16)
          pl.BlockSpec((1, Hh), lambda b: (0, 0)),               # dense_b
          pl.BlockSpec((1, Hh), lambda b: (0, 0)),               # ln_w
          pl.BlockSpec((1, Hh), lambda b: (0, 0)),               # ln_b
          pl.BlockSpec((1, Hh), lambda b: (0, 0)),               # cls_w
          pl.BlockSpec((1, 1), lambda b: (0, 0)),                # cls_b
          smem,                                                  # (tw, aw, fb, inv_w2)
      ],
      out_specs=(
          pl.BlockSpec((1, 1, 1), lambda b: (b, 0, 0)),          # logits
          pl.BlockSpec((1, S, S), lambda b: (b, 0, 0)),          # text_att1
          pl.BlockSpec((1, S, S), lambda b: (b, 0, 0)),          # fusion_att1
      ),
      out_shape=(
          jax.ShapeDtypeStruct((B, 1, 1), f32),
          jax.ShapeDtypeStruct((B, S, S), f32),
          jax.ShapeDtypeStruct((B, S, S), f32),
      ),
      compiler_params=cp,
  )(td, ad, hidden, ext_mask[:, None, :], ext_mask[:, :, None],
    dense_w, params['dense_b'], params['ln_w'], params['ln_b'],
    params['cls_w'], params['cls_b'], scalars)

  return logits[:, 0, :], text_att, fusion_att


def language_embedding(params, input_ids, token_type_ids):
  """Synthetic replacement of LanguageEmbeddingLayer (glue, plain JAX)."""
  S = input_ids.shape[1]
  x = (params['word_emb'][input_ids]
       + params['pos_emb'][jnp.arange(S)][None, :, :]
       + params['type_emb'][token_type_ids])
  u = x.mean(-1, keepdims=True)
  s = ((x - u) ** 2).mean(-1, keepdims=True)
  x = (x - u) / jnp.sqrt(s + LN_EPS)
  return params['emb_ln_w'] * x + params['emb_ln_b']


def init_params(key, fusion_dim, vocab_size, max_seq):
  ks = jax.random.split(key, 8)
  n = lambda k, shape: (0.02 * jax.random.normal(k, shape)).astype(jnp.float32)
  return {
      # synthetic BERT embeddings (glue)
      'word_emb': n(ks[0], (vocab_size, H)),
      'pos_emb': n(ks[1], (max_seq, H)),
      'type_emb': n(ks[2], (2, H)),
      'emb_ln_w': jnp.ones((H,), jnp.float32),
      'emb_ln_b': jnp.zeros((H,), jnp.float32),
      # BertFinetun parameters
      'wt': n(ks[3], (H, PROJ)),                    # proj_t weight (transposed)
      'wa': n(ks[4], (fusion_dim, PROJ)),           # proj_a weight (transposed)
      'dense_w': n(ks[5], (H, H)),                  # dense weight (pre-transposed)
      'dense_b': jnp.zeros((1, H), jnp.float32),
      'ln_w': jnp.ones((1, H), jnp.float32),
      'ln_b': jnp.zeros((1, H), jnp.float32),
      'cls_w': n(ks[6], (1, H)),                    # classifier Linear(768,1) weight
      'cls_b': jnp.zeros((1, 1), jnp.float32),
      'text_w': jnp.array(1.0, jnp.float32),        # text_weight_1.fill_(1)
      'audio_w': jnp.array(1.0, jnp.float32),       # audio_weight_1.fill_(1)
      'fusion_b': jnp.array(0.0, jnp.float32),      # bias.fill_(0)
  }


def bert_for_sequence_classification(params, input_ids, all_audio_data,
                                     token_type_ids, attention_mask):
  # encoder + dropout(identity)
  hidden = language_embedding(params, input_ids, token_type_ids)
  # extended_attention_mask = (1 - mask) * -10000  (squeezed to [B, S])
  ext_mask = (1.0 - attention_mask.astype(jnp.float32)) * -10000.0
  logits, text_att, fusion_att = run_finetune_classifier(
      hidden.astype(jnp.float32), all_audio_data.astype(jnp.float32),
      ext_mask, params)
  return logits, text_att, fusion_att


if __name__ == "__main__":
  B, S, FUSION_DIM, VOCAB = 2, 8, 16, 100
  key = jax.random.PRNGKey(0)
  k_par, k_ids, k_typ, k_aud = jax.random.split(key, 4)

  params = init_params(k_par, FUSION_DIM, VOCAB, S)

  input_ids = jax.random.randint(k_ids, (B, S), 0, VOCAB, dtype=jnp.int32)
  token_type_ids = jax.random.randint(k_typ, (B, S), 0, 2, dtype=jnp.int32)
  attention_mask = jnp.array([[1, 1, 1, 1, 1, 1, 1, 1],
                              [1, 1, 1, 1, 1, 1, 0, 0]], dtype=jnp.int32)
  all_audio_data = jax.random.normal(k_aud, (B, S, FUSION_DIM), dtype=jnp.float32)

  logits, text_att, fusion_att = bert_for_sequence_classification(
      params, input_ids, all_audio_data, token_type_ids, attention_mask)
  jax.block_until_ready((logits, text_att, fusion_att))
  assert logits.shape == (B, 1)
  assert text_att.shape == (B, S, S)
  assert fusion_att.shape == (B, S, S)
  print("KERNEL_OK")
</pallas_src>

<mosaic_0001>
module attributes {stable_mosaic.version = 11 : i64} {
  func.func @proj_kernel(%arg0: i32, %arg1: memref<1x8x768xf32, #tpu.memory_space<vmem>>, %arg2: memref<1x8x16xf32, #tpu.memory_space<vmem>>, %arg3: memref<768x128xbf16, #tpu.memory_space<vmem>>, %arg4: memref<16x128xbf16, #tpu.memory_space<vmem>>, %arg5: memref<1x8x128xbf16, #tpu.memory_space<vmem>>, %arg6: memref<1x8x128xbf16, #tpu.memory_space<vmem>>, %arg7: memref<1x1x1xf32, #tpu.memory_space<vmem>>) attributes {dimension_semantics = [#tpu.dimension_semantics<parallel>], iteration_bounds = array<i64: 2>, scalar_prefetch = 0 : i64, scratch_operands = 0 : i64, tpu.core_type = #tpu.core_type<tc>, window_params = [{transform_indices = @transform_0, window_bounds = array<i64: 1, 8, 768>}, {transform_indices = @transform_1, window_bounds = array<i64: 1, 8, 16>}, {pipeline_mode = #tpu.pipeline_mode<synchronous>, transform_indices = @transform_2, window_bounds = array<i64: 768, 128>}, {pipeline_mode = #tpu.pipeline_mode<synchronous>, transform_indices = @transform_3, window_bounds = array<i64: 16, 128>}, {transform_indices = @transform_4, window_bounds = array<i64: 1, 8, 128>}, {transform_indices = @transform_5, window_bounds = array<i64: 1, 8, 128>}, {transform_indices = @transform_6, window_bounds = array<i64: 1, 1, 1>}]} {
    %c0 = arith.constant 0 : index
    %c0_0 = arith.constant 0 : index
    %c0_1 = arith.constant 0 : index
    %0 = vector.load %arg1[%c0, %c0_0, %c0_1] : memref<1x8x768xf32, #tpu.memory_space<vmem>>, vector<1x8x768xf32>
    %1 = vector.shape_cast %0 : vector<1x8x768xf32> to vector<8x768xf32>
    %2 = arith.truncf %1 : vector<8x768xf32> to vector<8x768xbf16>
    %c0_2 = arith.constant 0 : index
    %c0_3 = arith.constant 0 : index
    %c0_4 = arith.constant 0 : index
    %3 = vector.load %arg2[%c0_2, %c0_3, %c0_4] : memref<1x8x16xf32, #tpu.memory_space<vmem>>, vector<1x8x16xf32>
    %4 = vector.shape_cast %3 : vector<1x8x16xf32> to vector<8x16xf32>
    %5 = arith.truncf %4 : vector<8x16xf32> to vector<8x16xbf16>
    %c0_5 = arith.constant 0 : index
    %c0_6 = arith.constant 0 : index
    %6 = vector.load %arg3[%c0_5, %c0_6] : memref<768x128xbf16, #tpu.memory_space<vmem>>, vector<768x128xbf16>
    %cst = arith.constant dense<0.000000e+00> : vector<8x128xf32>
    %7 = tpu.matmul %2, %6, %cst {dimension_numbers = #tpu.dot_dimension_numbers<[1], [0], [0], [1], [0, 0, 1, 1], [], []>} : vector<8x768xbf16>, vector<768x128xbf16>, vector<8x128xf32> -> vector<8x128xf32>
    %c0_7 = arith.constant 0 : index
    %c0_8 = arith.constant 0 : index
    %8 = vector.load %arg4[%c0_7, %c0_8] : memref<16x128xbf16, #tpu.memory_space<vmem>>, vector<16x128xbf16>
    %cst_9 = arith.constant dense<0.000000e+00> : vector<8x128xf32>
    %9 = tpu.matmul %5, %8, %cst_9 {dimension_numbers = #tpu.dot_dimension_numbers<[1], [0], [0], [1], [0, 0, 1, 1], [], []>} : vector<8x16xbf16>, vector<16x128xbf16>, vector<8x128xf32> -> vector<8x128xf32>
    %10 = arith.truncf %7 : vector<8x128xf32> to vector<8x128xbf16>
    %c0_10 = arith.constant 0 : index
    %c0_11 = arith.constant 0 : index
    %c0_12 = arith.constant 0 : index
    %11 = vector.load %arg5[%c0_10, %c0_11, %c0_12] : memref<1x8x128xbf16, #tpu.memory_space<vmem>>, vector<1x8x128xbf16>
    %12 = vector.shape_cast %11 : vector<1x8x128xbf16> to vector<8x128xbf16>
    %13 = vector.shape_cast %10 : vector<8x128xbf16> to vector<1x8x128xbf16>
    tpu.vector_store %arg5[%c0_10, %c0_11, %c0_12], %13 {strides = array<i32>} : memref<1x8x128xbf16, #tpu.memory_space<vmem>>, vector<1x8x128xbf16>,
    %14 = arith.truncf %9 : vector<8x128xf32> to vector<8x128xbf16>
    %c0_13 = arith.constant 0 : index
    %c0_14 = arith.constant 0 : index
    %c0_15 = arith.constant 0 : index
    %15 = vector.load %arg6[%c0_13, %c0_14, %c0_15] : memref<1x8x128xbf16, #tpu.memory_space<vmem>>, vector<1x8x128xbf16>
    %16 = vector.shape_cast %15 : vector<1x8x128xbf16> to vector<8x128xbf16>
    %17 = vector.shape_cast %14 : vector<8x128xbf16> to vector<1x8x128xbf16>
    tpu.vector_store %arg6[%c0_13, %c0_14, %c0_15], %17 {strides = array<i32>} : memref<1x8x128xbf16, #tpu.memory_space<vmem>>, vector<1x8x128xbf16>,
    %18 = arith.mulf %7, %7 : vector<8x128xf32>
    %cst_16 = arith.constant dense<0.000000e+00> : vector<8xf32>
    %19 = vector.multi_reduction <add>, %18, %cst_16 [1] : vector<8x128xf32> to vector<8xf32>
    %20 = vector.shape_cast %19 : vector<8xf32> to vector<8x1xf32>
    %cst_17 = arith.constant dense<0.000000e+00> : vector<1xf32>
    %21 = vector.multi_reduction <add>, %20, %cst_17 [0] : vector<8x1xf32> to vector<1xf32>
    %22 = vector.shape_cast %21 : vector<1xf32> to vector<1x1xf32>
    %c0_18 = arith.constant 0 : index
    %c0_19 = arith.constant 0 : index
    %c0_20 = arith.constant 0 : index
    %23 = vector.load %arg7[%c0_18, %c0_19, %c0_20] : memref<1x1x1xf32, #tpu.memory_space<vmem>>, vector<1x1x1xf32>
    %24 = vector.shape_cast %23 : vector<1x1x1xf32> to vector<1x1xf32>
    %25 = vector.shape_cast %22 : vector<1x1xf32> to vector<1x1x1xf32>
    tpu.vector_store %arg7[%c0_18, %c0_19, %c0_20], %25 {strides = array<i32>} : memref<1x1x1xf32, #tpu.memory_space<vmem>>, vector<1x1x1xf32>,
    return
  }
  func.func @transform_0(%arg0: i32) -> (i32, i32, i32) {
    %c0_i32 = arith.constant 0 : i32
    %c0_i32_0 = arith.constant 0 : i32
    %c0_i32_1 = arith.constant 0 : i32
    return %arg0, %c0_i32, %c0_i32_0 : i32, i32, i32
  }
  func.func @transform_1(%arg0: i32) -> (i32, i32, i32) {
    %c0_i32 = arith.constant 0 : i32
    %c0_i32_0 = arith.constant 0 : i32
    %c0_i32_1 = arith.constant 0 : i32
    return %arg0, %c0_i32, %c0_i32_0 : i32, i32, i32
  }
  func.func @transform_2(%arg0: i32) -> (i32, i32) {
    %c0_i32 = arith.constant 0 : i32
    %c0_i32_0 = arith.constant 0 : i32
    %c0_i32_1 = arith.constant 0 : i32
    return %c0_i32, %c0_i32_0 : i32, i32
  }
  func.func @transform_3(%arg0: i32) -> (i32, i32) {
    %c0_i32 = arith.constant 0 : i32
    %c0_i32_0 = arith.constant 0 : i32
    %c0_i32_1 = arith.constant 0 : i32
    return %c0_i32, %c0_i32_0 : i32, i32
  }
  func.func @transform_4(%arg0: i32) -> (i32, i32, i32) {
    %c0_i32 = arith.constant 0 : i32
    %c0_i32_0 = arith.constant 0 : i32
    %c0_i32_1 = arith.constant 0 : i32
    return %arg0, %c0_i32, %c0_i32_0 : i32, i32, i32
  }
  func.func @transform_5(%arg0: i32) -> (i32, i32, i32) {
    %c0_i32 = arith.constant 0 : i32
    %c0_i32_0 = arith.constant 0 : i32
    %c0_i32_1 = arith.constant 0 : i32
    return %arg0, %c0_i32, %c0_i32_0 : i32, i32, i32
  }
  func.func @transform_6(%arg0: i32) -> (i32, i32, i32) {
    %c0_i32 = arith.constant 0 : i32
    %c0_i32_0 = arith.constant 0 : i32
    %c0_i32_1 = arith.constant 0 : i32
    return %arg0, %c0_i32, %c0_i32_0 : i32, i32, i32
  }
}

</mosaic_0001>

<llo_original>
// kernel: tpu_custom_call.1
$region0: #{tpu_custom_call.1}
  #allocation0 [shape = 'u32[]', space=smem, size = 0x4, offset = 0x4, fixed_abs, tag = 'smem constant byte address 0x4 - core index']
  #allocation1 [shape = 'u32[144,128]{1,0:T(1,128)}', space=vmem, size = 0x12000, scoped, tag = 'internal scratch']
  %s0 = inlined_call_operand.hbm [shape: f32[2,8,768], index: 0, kind: input, shape index: {}]
  %s1 = inlined_call_operand.hbm [shape: f32[2,8,16], index: 1, kind: input, shape index: {}]
  %s2 = inlined_call_operand.hbm [shape: bf16[768,128], index: 2, kind: input, shape index: {}]
  %s3 = inlined_call_operand.hbm [shape: bf16[16,128], index: 3, kind: input, shape index: {}]
  %s4 = inlined_call_operand.hbm [shape: bf16[2,8,128], index: 4, kind: output, shape index: {0}]
  %s5 = inlined_call_operand.hbm [shape: bf16[2,8,128], index: 5, kind: output, shape index: {1}]
  %s6 = inlined_call_operand.hbm [shape: f32[2,1,1], index: 6, kind: output, shape index: {2}]
  %7 = xla_tuple %s4, %s5, %s6
  %s8 = sld [smem:[#allocation0]]
  $region81: #{tpu_custom_call.1} parent=0
    _
  %s10 = ssub.s32 1, %s8
  %s11 = scalar_select 0, %s10, %s8
  $region1: #{tpu_custom_call.1} parent=0
    #allocation2 [shape = 'u8[49152]{0}', space=vmem, size = 0xc000, scoped, tag = 'input window, operand 0']
    #allocation3 [shape = 's32[2]{0}', space=sflag, size = 0x8, scoped, tag = 'scoped memory for tpu_custom_call.1']
    #allocation4 [shape = 's32[2]{0}', space=sflag, size = 0x8, scoped, tag = 'scoped memory for tpu_custom_call.1']
    #allocation5 [shape = 'u8[8192]{0}', space=vmem, size = 0x2000, scoped, tag = 'input window, operand 1']
    #allocation6 [shape = 's32[2]{0}', space=sflag, size = 0x8, scoped, tag = 'scoped memory for tpu_custom_call.1']
    #allocation7 [shape = 'u8[196608]{0}', space=vmem, size = 0x30000, scoped, tag = 'input window, operand 2, single buffered']
    #allocation8 [shape = 'u8[4096]{0}', space=vmem, size = 0x1000, scoped, tag = 'input window, operand 3, single buffered']
    #allocation9 [shape = 's32[1]{0}', space=sflag, size = 0x4, scoped, tag = 'scoped memory for tpu_custom_call.1']
    #allocation10 [shape = 'u8[4096]{0}', space=vmem, size = 0x1000, scoped, tag = 'output window, operand 0']
    #allocation11 [shape = 'u8[4096]{0}', space=vmem, size = 0x1000, scoped, tag = 'output window, operand 1']
    #allocation12 [shape = 's32[2]{0}', space=sflag, size = 0x8, scoped, tag = 'scoped memory for tpu_custom_call.1']
    #allocation13 [shape = 'u8[1024]{0}', space=vmem, size = 0x400, scoped, tag = 'output window, operand 2']
    %12 = vsyncpa [#allocation3], 0
    %s13 = scalar_lea.sflag [#allocation3], 1
    %14 = vsyncpa %s13, 0
    %15 = vsyncpa [#allocation6], 0
    %s16 = scalar_lea.sflag [#allocation6], 1
    %17 = vsyncpa %s16, 0
    %18 = vsyncpa [#allocation9], 0
    %19 = vsyncpa [#allocation4], 0
    %s20 = scalar_lea.sflag [#allocation4], 1
    %21 = vsyncpa %s20, 0
    %22 = vsyncpa [#allocation12], 0
    %s23 = scalar_lea.sflag [#allocation12], 1
    %24 = vsyncpa %s23, 0
    loop: start=0, step=1, limit=4
    $region2: #{tpu_custom_call.1} parent=1 // loop_pre_header
      _
    $region3: #{tpu_custom_call.1} parent=1 // loop_header
      %s26 = sphi 0, %s30
      %p27 = scmp.ge.s32.totalorder %s26, 4
      %s36 = sphi 0, %s38
      %s39 = sphi 0, %s36
      %s40 = sphi 0, %s39
      %s56 = sphi 0, %s40
      %s62 = sphi 0, %s64
      %s65 = sphi 0, %s62
      %s66 = sphi 0, %s65
      %s82 = sphi 0, %s66
      %s86 = sphi 0, %s86
      %s88 = sphi 0, %s86
      %s89 = sphi 0, %s88
      %s103 = sphi 0, %s89
      %s107 = sphi 0, %s107
      %s109 = sphi 0, %s107
      %s110 = sphi 0, %s109
      %s124 = sphi 0, %s110
      %s130 = sphi 0, %s132
      %s133 = sphi 0, %s130
      %s134 = sphi 0, %s133
      %s150 = sphi 0, %s134
      %s156 = sphi 0, %s158
      %s159 = sphi 0, %s156
      %s160 = sphi 0, %s159
      %s176 = sphi 0, %s160
      %s182 = sphi 0, %s184
      %s185 = sphi 0, %s182
      %s186 = sphi 0, %s185
      %s202 = sphi 0, %s186
    $region4: #{tpu_custom_call.1} parent=1 // loop_header_branch
      %29 = sbr.rel (%p27) target = $region8
    $region5: #{tpu_custom_call.1} parent=1 // loop_body
      %s31 = ssub.s32 %s26, 1
      %s32 = ssub.s32 %s26, 2
      %s33 = sadd.s32 %s26, 1
      %s34 = ssub.s32 %s26, %s33
      %p35 = scmp.eq.s32.totalorder %s34, 0
      %s37 = sadd.s32 %s36, 1
      %s38 = scalar_select %p35, %s36, %s37
      %p41 = pneg %p35
      %p42 = scmp.eq.s32.totalorder %s26, 1
      %p43 = por %p41, %p42
      %p44 = scmp.ne.s32.totalorder %s36, %s39
      %p45 = scmp.eq.s32.totalorder %s26, 0
      %p46 = por %p44, %p45
      %p47 = scmp.ne.s32.totalorder %s36, %s39
      %p48 = scmp.eq.s32.totalorder %s31, 1
      %p49 = por %p47, %p48
      %p50 = scmp.ne.s32.totalorder %s39, %s40
      %p51 = scmp.eq.s32.totalorder %s31, 0
      %p52 = por %p50, %p51
      %p53 = scmp.ne.s32.totalorder %s39, %s40
      %p54 = scmp.eq.s32.totalorder %s32, 1
      %p55 = por %p53, %p54
      %p57 = scmp.ne.s32.totalorder %s40, %s56
      %p58 = scmp.eq.s32.totalorder %s32, 0
      %p59 = por %p57, %p58
      %s60 = ssub.s32 %s26, %s33
      %p61 = scmp.eq.s32.totalorder %s60, 0
      %s63 = sadd.s32 %s62, 1
      %s64 = scalar_select %p61, %s62, %s63
      %p67 = pneg %p61
      %p68 = scmp.eq.s32.totalorder %s26, 1
      %p69 = por %p67, %p68
      %p70 = scmp.ne.s32.totalorder %s62, %s65
      %p71 = scmp.eq.s32.totalorder %s26, 0
      %p72 = por %p70, %p71
      %p73 = scmp.ne.s32.totalorder %s62, %s65
      %p74 = scmp.eq.s32.totalorder %s31, 1
      %p75 = por %p73, %p74
      %p76 = scmp.ne.s32.totalorder %s65, %s66
      %p77 = scmp.eq.s32.totalorder %s31, 0
      %p78 = por %p76, %p77
      %p79 = scmp.ne.s32.totalorder %s65, %s66
      %p80 = scmp.eq.s32.totalorder %s32, 1
      %p81 = por %p79, %p80
      %p83 = scmp.ne.s32.totalorder %s66, %s82
      %p84 = scmp.eq.s32.totalorder %s32, 0
      %p85 = por %p83, %p84
      %s87 = sadd.s32 %s86, 1
      %p90 = scmp.eq.s32.totalorder %s26, 1
      %p91 = scmp.ne.s32.totalorder %s86, %s88
      %p92 = scmp.eq.s32.totalorder %s26, 0
      %p93 = por %p91, %p92
      %p94 = scmp.ne.s32.totalorder %s86, %s88
      %p95 = scmp.eq.s32.totalorder %s31, 1
      %p96 = por %p94, %p95
      %p97 = scmp.ne.s32.totalorder %s88, %s89
      %p98 = scmp.eq.s32.totalorder %s31, 0
      %p99 = por %p97, %p98
      %p100 = scmp.ne.s32.totalorder %s88, %s89
      %p101 = scmp.eq.s32.totalorder %s32, 1
      %p102 = por %p100, %p101
      %p104 = scmp.ne.s32.totalorder %s89, %s103
      %p105 = scmp.eq.s32.totalorder %s32, 0
      %p106 = por %p104, %p105
      %s108 = sadd.s32 %s107, 1
      %p111 = scmp.eq.s32.totalorder %s26, 1
      %p112 = scmp.ne.s32.totalorder %s107, %s109
      %p113 = scmp.eq.s32.totalorder %s26, 0
      %p114 = por %p112, %p113
      %p115 = scmp.ne.s32.totalorder %s107, %s109
      %p116 = scmp.eq.s32.totalorder %s31, 1
      %p117 = por %p115, %p116
      %p118 = scmp.ne.s32.totalorder %s109, %s110
      %p119 = scmp.eq.s32.totalorder %s31, 0
      %p120 = por %p118, %p119
      %p121 = scmp.ne.s32.totalorder %s109, %s110
      %p122 = scmp.eq.s32.totalorder %s32, 1
      %p123 = por %p121, %p122
      %p125 = scmp.ne.s32.totalorder %s110, %s124
      %p126 = scmp.eq.s32.totalorder %s32, 0
      %p127 = por %p125, %p126
      %s128 = ssub.s32 %s26, %s33
      %p129 = scmp.eq.s32.totalorder %s128, 0
      %s131 = sadd.s32 %s130, 1
      %s132 = scalar_select %p129, %s130, %s131
      %p135 = pneg %p129
      %p136 = scmp.eq.s32.totalorder %s26, 1
      %p137 = por %p135, %p136
      %p138 = scmp.ne.s32.totalorder %s130, %s133
      %p139 = scmp.eq.s32.totalorder %s26, 0
      %p140 = por %p138, %p139
      %p141 = scmp.ne.s32.totalorder %s130, %s133
      %p142 = scmp.eq.s32.totalorder %s31, 1
      %p143 = por %p141, %p142
      %p144 = scmp.ne.s32.totalorder %s133, %s134
      %p145 = scmp.eq.s32.totalorder %s31, 0
      %p146 = por %p144, %p145
      %p147 = scmp.ne.s32.totalorder %s133, %s134
      %p148 = scmp.eq.s32.totalorder %s32, 1
      %p149 = por %p147, %p148
      %p151 = scmp.ne.s32.totalorder %s134, %s150
      %p152 = scmp.eq.s32.totalorder %s32, 0
      %p153 = por %p151, %p152
      %s154 = ssub.s32 %s26, %s33
      %p155 = scmp.eq.s32.totalorder %s154, 0
      %s157 = sadd.s32 %s156, 1
      %s158 = scalar_select %p155, %s156, %s157
      %p161 = pneg %p155
      %p162 = scmp.eq.s32.totalorder %s26, 1
      %p163 = por %p161, %p162
      %p164 = scmp.ne.s32.totalorder %s156, %s159
      %p165 = scmp.eq.s32.totalorder %s26, 0
      %p166 = por %p164, %p165
      %p167 = scmp.ne.s32.totalorder %s156, %s159
      %p168 = scmp.eq.s32.totalorder %s31, 1
      %p169 = por %p167, %p168
      %p170 = scmp.ne.s32.totalorder %s159, %s160
      %p171 = scmp.eq.s32.totalorder %s31, 0
      %p172 = por %p170, %p171
      %p173 = scmp.ne.s32.totalorder %s159, %s160
      %p174 = scmp.eq.s32.totalorder %s32, 1
      %p175 = por %p173, %p174
      %p177 = scmp.ne.s32.totalorder %s160, %s176
      %p178 = scmp.eq.s32.totalorder %s32, 0
      %p179 = por %p177, %p178
      %s180 = ssub.s32 %s26, %s33
      %p181 = scmp.eq.s32.totalorder %s180, 0
      %s183 = sadd.s32 %s182, 1
      %s184 = scalar_select %p181, %s182, %s183
      %p187 = pneg %p181
      %p188 = scmp.eq.s32.totalorder %s26, 1
      %p189 = por %p187, %p188
      %p190 = scmp.ne.s32.totalorder %s182, %s185
      %p191 = scmp.eq.s32.totalorder %s26, 0
      %p192 = por %p190, %p191
      %p193 = scmp.ne.s32.totalorder %s182, %s185
      %p194 = scmp.eq.s32.totalorder %s31, 1
      %p195 = por %p193, %p194
      %p196 = scmp.ne.s32.totalorder %s185, %s186
      %p197 = scmp.eq.s32.totalorder %s31, 0
      %p198 = por %p196, %p197
      %p199 = scmp.ne.s32.totalorder %s185, %s186
      %p200 = scmp.eq.s32.totalorder %s32, 1
      %p201 = por %p199, %p200
      %p203 = scmp.ne.s32.totalorder %s186, %s202
      %p204 = scmp.eq.s32.totalorder %s32, 0
      %p205 = por %p203, %p204
      %p206 = scmp.le.s32.totalorder 1, %s26
      %p207 = scmp.lt.s32.totalorder %s26, 3
      %p208 = pnand %p206, %p207
      %p209 = pneg %p208
      // Predicated region
      $region9: #{tpu_custom_call.1} parent=5 // pred_check
        _
      $region10: #{tpu_custom_call.1} parent=5 // pred_check_branch
        %211 = sbr.rel (%p208) target = $region12
      $region11: #{tpu_custom_call.1} parent=5 // pred_region
        %s212 = ssub.s32 %s26, 1
        // Predicated region
        $region13: #{tpu_custom_call.1} parent=11 // pred_check
          %p213 = pneg %p99
        $region14: #{tpu_custom_call.1} parent=11 // pred_check_branch
          %215 = sbr.rel (%p213) target = $region16
        $region15: #{tpu_custom_call.1} parent=11 // pred_region
          %s217 = ssub.s32 6144, 6144
          %218 = vsyncadd [#allocation6], %s217
          %s219 = sshll.u32 [#allocation7], 4
          %s220 = int_to_ptr.vmem [resolvable:$true] %s219
          %225 = dma.hbm_to_vmem [thread:$0]  %s2, 6144, %s220, [#allocation6], 64, 64, 4
        $region16: #{tpu_custom_call.1} parent=11 // pred_fallthru
          _
        // Predicated region
        $region17: #{tpu_custom_call.1} parent=11 // pred_check
          %p226 = pneg %p120
        $region18: #{tpu_custom_call.1} parent=11 // pred_check_branch
          %228 = sbr.rel (%p226) target = $region20
        $region19: #{tpu_custom_call.1} parent=11 // pred_region
          %s230 = ssub.s32 128, 128
          %231 = vsyncadd [#allocation9], %s230
          %s232 = sshll.u32 [#allocation8], 4
          %s233 = int_to_ptr.vmem [resolvable:$true] %s232
          %238 = dma.hbm_to_vmem [thread:$0]  %s3, 128, %s233, [#allocation9], 64, 64, 4
        $region20: #{tpu_custom_call.1} parent=11 // pred_fallthru
          _
      $region12: #{tpu_custom_call.1} parent=5 // pred_fallthru
        _
      %p239 = scmp.lt.s32.totalorder %s26, 2
      // Predicated region
      $region21: #{tpu_custom_call.1} parent=5 // pred_check
        %p240 = pneg %p239
      $region22: #{tpu_custom_call.1} parent=5 // pred_check_branch
        %242 = sbr.rel (%p240) target = $region24
      $region23: #{tpu_custom_call.1} parent=5 // pred_region
        // Predicated region
        $region25: #{tpu_custom_call.1} parent=23 // pred_check
          %p243 = pneg %p46
        $region26: #{tpu_custom_call.1} parent=23 // pred_check_branch
          %245 = sbr.rel (%p243) target = $region28
        $region27: #{tpu_custom_call.1} parent=23 // pred_region
          %s246 = sand.u32 %s36, 1
          %s247 = scalar_lea.sflag [#allocation3], %s246
          %s248 = sand.u32 %s36, 1
          %s249 = smul.addr %s248, 48
          %s250 = scalar_lea.vmem [#allocation2], %s249
          %s252 = ssub.s32 768, 768
          %253 = vsyncadd %s247, %s252
          %s254 = smul.addr %s26, 6
          %s255 = smul.addr %s254, 128
          %s256 = scalar_lea.hbm %s0, %s255
          %s258 = sshll.u32 %s250, 4
          %s259 = int_to_ptr.vmem [resolvable:$true] %s258
          %261 = dma.hbm_to_vmem [thread:$0]  %s256, 768, %s259, %s247
        $region28: #{tpu_custom_call.1} parent=23 // pred_fallthru
          _
        // Predicated region
        $region29: #{tpu_custom_call.1} parent=23 // pred_check
          %p262 = pneg %p72
        $region30: #{tpu_custom_call.1} parent=23 // pred_check_branch
          %264 = sbr.rel (%p262) target = $region32
        $region31: #{tpu_custom_call.1} parent=23 // pred_region
          %s265 = sand.u32 %s26, 1
          %s266 = scalar_lea.sflag [#allocation6], %s265
          %s267 = sand.u32 %s62, 1
          %s268 = smul.addr %s267, 8
          %s269 = scalar_lea.vmem [#allocation5], %s268
          %s271 = ssub.s32 128, 128
          %272 = vsyncadd %s266, %s271
          %s273 = smul.addr %s26, 128
          %s274 = scalar_lea.hbm %s1, %s273
          %s276 = sshll.u32 %s269, 4
          %s277 = int_to_ptr.vmem [resolvable:$true] %s276
          %279 = dma.hbm_to_vmem [thread:$0]  %s274, 128, %s277, %s266
        $region32: #{tpu_custom_call.1} parent=23 // pred_fallthru
          _
      $region24: #{tpu_custom_call.1} parent=5 // pred_fallthru
        _
      %p280 = scmp.le.s32.totalorder 1, %s26
      %p281 = scmp.lt.s32.totalorder %s26, 3
      %p282 = pnand %p280, %p281
      %p283 = pneg %p282
      // Predicated region
      $region33: #{tpu_custom_call.1} parent=5 // pred_check
        _
      $region34: #{tpu_custom_call.1} parent=5 // pred_check_branch
        %285 = sbr.rel (%p282) target = $region36
      $region35: #{tpu_custom_call.1} parent=5 // pred_region
        %s286 = ssub.s32 %s26, 1
        %s287 = sand.u32 %s39, 1
        %s288 = scalar_lea.sflag [#allocation3], %s287
        %s289 = sand.u32 %s39, 1
        %s290 = smul.addr %s289, 48
        %s291 = scalar_lea.vmem [#allocation2], %s290
        // Predicated region
        $region37: #{tpu_custom_call.1} parent=35 // pred_check
          %p292 = pneg %p52
        $region38: #{tpu_custom_call.1} parent=35 // pred_check_branch
          %294 = sbr.rel (%p292) target = $region40
        $region39: #{tpu_custom_call.1} parent=35 // pred_region
          %295 = dma.done %s288, 768
        $region40: #{tpu_custom_call.1} parent=35 // pred_fallthru
          _
        %s296 = sand.u32 %s31, 1
        %s297 = scalar_lea.sflag [#allocation6], %s296
        %s298 = sand.u32 %s65, 1
        %s299 = smul.addr %s298, 8
        %s300 = scalar_lea.vmem [#allocation5], %s299
        // Predicated region
        $region41: #{tpu_custom_call.1} parent=35 // pred_check
          %p301 = pneg %p78
        $region42: #{tpu_custom_call.1} parent=35 // pred_check_branch
          %303 = sbr.rel (%p301) target = $region44
        $region43: #{tpu_custom_call.1} parent=35 // pred_region
          %304 = dma.done %s297, 128
        $region44: #{tpu_custom_call.1} parent=35 // pred_fallthru
          _
        // Predicated region
        $region45: #{tpu_custom_call.1} parent=35 // pred_check
          %p305 = pneg %p99
        $region46: #{tpu_custom_call.1} parent=35 // pred_check_branch
          %307 = sbr.rel (%p305) target = $region48
        $region47: #{tpu_custom_call.1} parent=35 // pred_region
          %308 = dma.done [#allocation6], 6144
        $region48: #{tpu_custom_call.1} parent=35 // pred_fallthru
          _
        // Predicated region
        $region49: #{tpu_custom_call.1} parent=35 // pred_check
          %p309 = pneg %p120
        $region50: #{tpu_custom_call.1} parent=35 // pred_check_branch
          %311 = sbr.rel (%p309) target = $region52
        $region51: #{tpu_custom_call.1} parent=35 // pred_region
          %312 = dma.done [#allocation9], 128
        $region52: #{tpu_custom_call.1} parent=35 // pred_fallthru
          _
        %s313 = sand.u32 %s39, 1
        %s314 = scalar_lea.sflag [#allocation3], %s313
        %s315 = sand.u32 %s39, 1
        %s316 = smul.addr %s315, 48
        %s317 = scalar_lea.vmem [#allocation2], %s316
        %p318 = pneg %p52
        %p319 = pneg %p49
        %s320 = sand.u32 %s31, 1
        %s321 = scalar_lea.sflag [#allocation6], %s320
        %s322 = sand.u32 %s65, 1
        %s323 = smul.addr %s322, 8
        %s324 = scalar_lea.vmem [#allocation5], %s323
        %p325 = pneg %p78
        %p326 = pneg %p75
        %p327 = pneg %p99
        %p328 = pneg %p96
        %p329 = pneg %p120
        %p330 = pneg %p117
        %p331 = pneg %p146
        %p332 = pneg %p143
        %s333 = sand.u32 %s133, 1
        %s334 = scalar_lea.sflag [#allocation4], %s333
        %s335 = sand.u32 %s133, 1
        %s336 = smul.addr %s335, 4
        %s337 = scalar_lea.vmem [#allocation10], %s336
        %p338 = pneg %p172
        %p339 = pneg %p169
        %s340 = sand.u32 %s31, 1
        %s341 = scalar_lea.sflag [#allocation12], %s340
        %s342 = sand.u32 %s159, 1
        %s343 = smul.addr %s342, 4
        %s344 = scalar_lea.vmem [#allocation11], %s343
        %p345 = pneg %p198
        %p346 = pneg %p195
        %s347 = sand.u32 %s31, 1
        %s348 = scalar_lea.sflag [#allocation12], %s347
        %s349 = sand.u32 %s185, 1
        %s350 = scalar_lea.vmem [#allocation13], %s349
        %v352 = vld [vmem:[%s291] sm:$0xff]
        %v353 = vld [vmem:[%s291 + $0x8] sm:$0xff]
        %v354 = vld [vmem:[%s291 + $0x10] sm:$0xff]
        %v355 = vld [vmem:[%s291 + $0x18] sm:$0xff]
        %v356 = vld [vmem:[%s291 + $0x20] sm:$0xff]
        %v357 = vld [vmem:[%s291 + $0x28] sm:$0xff]
        %v358 = vpack.c.bf16 %v352, %v352
        %v359 = vpack.c.bf16 %v353, %v353
        %v360 = vpack.c.bf16 %v354, %v354
        %v361 = vpack.c.bf16 %v355, %v355
        %v362 = vpack.c.bf16 %v356, %v356
        %v363 = vpack.c.bf16 %v357, %v357
        %v364 = vld [vmem:[%s300] sm:$0xff]
        %v365 = vpack.c.bf16 %v364, %v364
        %v366 = vld [vmem:[#allocation7] sm:$0xf]
        %v367 = vld [vmem:[#allocation7 + $0x4] sm:$0xf]
        %v368 = vld [vmem:[#allocation7 + $0x8] sm:$0xf]
        %v369 = vld [vmem:[#allocation7 + $0xc] sm:$0xf]
        %v370 = vld [vmem:[#allocation7 + $0x10] sm:$0xf]
        %v371 = vld [vmem:[#allocation7 + $0x14] sm:$0xf]
        %v372 = vld [vmem:[#allocation7 + $0x18] sm:$0xf]
        %v373 = vld [vmem:[#allocation7 + $0x1c] sm:$0xf]
        %v374 = vld [vmem:[#allocation7 + $0x20] sm:$0xf]
        %v375 = vld [vmem:[#allocation7 + $0x24] sm:$0xf]
        %v376 = vld [vmem:[#allocation7 + $0x28] sm:$0xf]
        %v377 = vld [vmem:[#allocation7 + $0x2c] sm:$0xf]
        %v378 = vld [vmem:[#allocation7 + $0x30] sm:$0xf]
        %v379 = vld [vmem:[#allocation7 + $0x34] sm:$0xf]
        %v380 = vld [vmem:[#allocation7 + $0x38] sm:$0xf]
        %v381 = vld [vmem:[#allocation7 + $0x3c] sm:$0xf]
        %v382 = vld [vmem:[#allocation7 + $0x40] sm:$0xf]
        %v383 = vld [vmem:[#allocation7 + $0x44] sm:$0xf]
        %v384 = vld [vmem:[#allocation7 + $0x48] sm:$0xf]
        %v385 = vld [vmem:[#allocation7 + $0x4c] sm:$0xf]
        %v386 = vld [vmem:[#allocation7 + $0x50] sm:$0xf]
        %v387 = vld [vmem:[#allocation7 + $0x54] sm:$0xf]
        %v388 = vld [vmem:[#allocation7 + $0x58] sm:$0xf]
        %v389 = vld [vmem:[#allocation7 + $0x5c] sm:$0xf]
        %v390 = vld [vmem:[#allocation7 + $0x60] sm:$0xf]
        %v391 = vld [vmem:[#allocation7 + $0x64] sm:$0xf]
        %v392 = vld [vmem:[#allocation7 + $0x68] sm:$0xf]
        %v393 = vld [vmem:[#allocation7 + $0x6c] sm:$0xf]
        %v394 = vld [vmem:[#allocation7 + $0x70] sm:$0xf]
        %v395 = vld [vmem:[#allocation7 + $0x74] sm:$0xf]
        %v396 = vld [vmem:[#allocation7 + $0x78] sm:$0xf]
        %v397 = vld [vmem:[#allocation7 + $0x7c] sm:$0xf]
        %v398 = vld [vmem:[#allocation7 + $0x80] sm:$0xf]
        %v399 = vld [vmem:[#allocation7 + $0x84] sm:$0xf]
        %v400 = vld [vmem:[#allocation7 + $0x88] sm:$0xf]
        %v401 = vld [vmem:[#allocation7 + $0x8c] sm:$0xf]
        %v402 = vld [vmem:[#allocation7 + $0x90] sm:$0xf]
        %v403 = vld [vmem:[#allocation7 + $0x94] sm:$0xf]
        %v404 = vld [vmem:[#allocation7 + $0x98] sm:$0xf]
        %v405 = vld [vmem:[#allocation7 + $0x9c] sm:$0xf]
        %v406 = vld [vmem:[#allocation7 + $0xa0] sm:$0xf]
        %v407 = vld [vmem:[#allocation7 + $0xa4] sm:$0xf]
        %v408 = vld [vmem:[#allocation7 + $0xa8] sm:$0xf]
        %v409 = vld [vmem:[#allocation7 + $0xac] sm:$0xf]
        %v410 = vld [vmem:[#allocation7 + $0xb0] sm:$0xf]
        %v411 = vld [vmem:[#allocation7 + $0xb4] sm:$0xf]
        %v412 = vld [vmem:[#allocation7 + $0xb8] sm:$0xf]
        %v413 = vld [vmem:[#allocation7 + $0xbc] sm:$0xf]
        %v414 = vld [vmem:[#allocation7 + $0xc0] sm:$0xf]
        %v415 = vld [vmem:[#allocation7 + $0xc4] sm:$0xf]
        %v416 = vld [vmem:[#allocation7 + $0xc8] sm:$0xf]
        %v417 = vld [vmem:[#allocation7 + $0xcc] sm:$0xf]
        %v418 = vld [vmem:[#allocation7 + $0xd0] sm:$0xf]
        %v419 = vld [vmem:[#allocation7 + $0xd4] sm:$0xf]
        %v420 = vld [vmem:[#allocation7 + $0xd8] sm:$0xf]
        %v421 = vld [vmem:[#allocation7 + $0xdc] sm:$0xf]
        %v422 = vld [vmem:[#allocation7 + $0xe0] sm:$0xf]
        %v423 = vld [vmem:[#allocation7 + $0xe4] sm:$0xf]
        %v424 = vld [vmem:[#allocation7 + $0xe8] sm:$0xf]
        %v425 = vld [vmem:[#allocation7 + $0xec] sm:$0xf]
        %v426 = vld [vmem:[#allocation7 + $0xf0] sm:$0xf]
        %v427 = vld [vmem:[#allocation7 + $0xf4] sm:$0xf]
        %v428 = vld [vmem:[#allocation7 + $0xf8] sm:$0xf]
        %v429 = vld [vmem:[#allocation7 + $0xfc] sm:$0xf]
        %v430 = vld [vmem:[#allocation7 + $0x100] sm:$0xf]
        %v431 = vld [vmem:[#allocation7 + $0x104] sm:$0xf]
        %v432 = vld [vmem:[#allocation7 + $0x108] sm:$0xf]
        %v433 = vld [vmem:[#allocation7 + $0x10c] sm:$0xf]
        %v434 = vld [vmem:[#allocation7 + $0x110] sm:$0xf]
        %v435 = vld [vmem:[#allocation7 + $0x114] sm:$0xf]
        %v436 = vld [vmem:[#allocation7 + $0x118] sm:$0xf]
        %v437 = vld [vmem:[#allocation7 + $0x11c] sm:$0xf]
        %v438 = vld [vmem:[#allocation7 + $0x120] sm:$0xf]
        %v439 = vld [vmem:[#allocation7 + $0x124] sm:$0xf]
        %v440 = vld [vmem:[#allocation7 + $0x128] sm:$0xf]
        %v441 = vld [vmem:[#allocation7 + $0x12c] sm:$0xf]
        %v442 = vld [vmem:[#allocation7 + $0x130] sm:$0xf]
        %v443 = vld [vmem:[#allocation7 + $0x134] sm:$0xf]
        %v444 = vld [vmem:[#allocation7 + $0x138] sm:$0xf]
        %v445 = vld [vmem:[#allocation7 + $0x13c] sm:$0xf]
        %v446 = vld [vmem:[#allocation7 + $0x140] sm:$0xf]
        %v447 = vld [vmem:[#allocation7 + $0x144] sm:$0xf]
        %v448 = vld [vmem:[#allocation7 + $0x148] sm:$0xf]
        %v449 = vld [vmem:[#allocation7 + $0x14c] sm:$0xf]
        %v450 = vld [vmem:[#allocation7 + $0x150] sm:$0xf]
        %v451 = vld [vmem:[#allocation7 + $0x154] sm:$0xf]
        %v452 = vld [vmem:[#allocation7 + $0x158] sm:$0xf]
        %v453 = vld [vmem:[#allocation7 + $0x15c] sm:$0xf]
        %v454 = vld [vmem:[#allocation7 + $0x160] sm:$0xf]
        %v455 = vld [vmem:[#allocation7 + $0x164] sm:$0xf]
        %v456 = vld [vmem:[#allocation7 + $0x168] sm:$0xf]
        %v457 = vld [vmem:[#allocation7 + $0x16c] sm:$0xf]
        %v458 = vld [vmem:[#allocation7 + $0x170] sm:$0xf]
        %v459 = vld [vmem:[#allocation7 + $0x174] sm:$0xf]
        %v460 = vld [vmem:[#allocation7 + $0x178] sm:$0xf]
        %v461 = vld [vmem:[#allocation7 + $0x17c] sm:$0xf]
        %v558 = vunpack.c.l.b16 %v366
        %v559 = vunpack.c.l.b16 %v367
        %v560 = vunpack.c.l.b16 %v368
        %v561 = vunpack.c.l.b16 %v369
        %v562 = vunpack.c.l.b16 %v370
        %v563 = vunpack.c.l.b16 %v371
        %v564 = vunpack.c.l.b16 %v372
        %v565 = vunpack.c.l.b16 %v373
        %v566 = vunpack.c.l.b16 %v374
        %v567 = vunpack.c.l.b16 %v375
        %v568 = vunpack.c.l.b16 %v376
        %v569 = vunpack.c.l.b16 %v377
        %v570 = vunpack.c.l.b16 %v378
        %v571 = vunpack.c.l.b16 %v379
        %v572 = vunpack.c.l.b16 %v380
        %v573 = vunpack.c.l.b16 %v381
        %v574 = vunpack.c.l.b16 %v382
        %v575 = vunpack.c.l.b16 %v383
        %v576 = vunpack.c.l.b16 %v384
        %v577 = vunpack.c.l.b16 %v385
        %v578 = vunpack.c.l.b16 %v386
        %v579 = vunpack.c.l.b16 %v387
        %v580 = vunpack.c.l.b16 %v388
        %v581 = vunpack.c.l.b16 %v389
        %v582 = vunpack.c.l.b16 %v390
        %v583 = vunpack.c.l.b16 %v391
        %v584 = vunpack.c.l.b16 %v392
        %v585 = vunpack.c.l.b16 %v393
        %v586 = vunpack.c.l.b16 %v394
        %v587 = vunpack.c.l.b16 %v395
        %v588 = vunpack.c.l.b16 %v396
        %v589 = vunpack.c.l.b16 %v397
        %v590 = vunpack.c.l.b16 %v398
        %v591 = vunpack.c.l.b16 %v399
        %v592 = vunpack.c.l.b16 %v400
        %v593 = vunpack.c.l.b16 %v401
        %v594 = vunpack.c.l.b16 %v402
        %v595 = vunpack.c.l.b16 %v403
        %v596 = vunpack.c.l.b16 %v404
        %v597 = vunpack.c.l.b16 %v405
        %v598 = vunpack.c.l.b16 %v406
        %v599 = vunpack.c.l.b16 %v407
        %v600 = vunpack.c.l.b16 %v408
        %v601 = vunpack.c.l.b16 %v409
        %v602 = vunpack.c.l.b16 %v410
        %v603 = vunpack.c.l.b16 %v411
        %v604 = vunpack.c.l.b16 %v412
        %v605 = vunpack.c.l.b16 %v413
        %v606 = vunpack.c.l.b16 %v414
        %v607 = vunpack.c.l.b16 %v415
        %v608 = vunpack.c.l.b16 %v416
        %v609 = vunpack.c.l.b16 %v417
        %v610 = vunpack.c.l.b16 %v418
        %v611 = vunpack.c.l.b16 %v419
        %v612 = vunpack.c.l.b16 %v420
        %v613 = vunpack.c.l.b16 %v421
        %v614 = vunpack.c.l.b16 %v422
        %v615 = vunpack.c.l.b16 %v423
        %v616 = vunpack.c.l.b16 %v424
        %v617 = vunpack.c.l.b16 %v425
        %v618 = vunpack.c.l.b16 %v426
        %v619 = vunpack.c.l.b16 %v427
        %v620 = vunpack.c.l.b16 %v428
        %v621 = vunpack.c.l.b16 %v429
        %v622 = vunpack.c.l.b16 %v430
        %v623 = vunpack.c.l.b16 %v431
        %v624 = vunpack.c.l.b16 %v432
        %v625 = vunpack.c.l.b16 %v433
        %v626 = vunpack.c.l.b16 %v434
        %v627 = vunpack.c.l.b16 %v435
        %v628 = vunpack.c.l.b16 %v436
        %v629 = vunpack.c.l.b16 %v437
        %v630 = vunpack.c.l.b16 %v438
        %v631 = vunpack.c.l.b16 %v439
        %v632 = vunpack.c.l.b16 %v440
        %v633 = vunpack.c.l.b16 %v441
        %v634 = vunpack.c.l.b16 %v442
        %v635 = vunpack.c.l.b16 %v443
        %v636 = vunpack.c.l.b16 %v444
        %v637 = vunpack.c.l.b16 %v445
        %v638 = vunpack.c.l.b16 %v446
        %v639 = vunpack.c.l.b16 %v447
        %v640 = vunpack.c.l.b16 %v448
        %v641 = vunpack.c.l.b16 %v449
        %v642 = vunpack.c.l.b16 %v450
        %v643 = vunpack.c.l.b16 %v451
        %v644 = vunpack.c.l.b16 %v452
        %v645 = vunpack.c.l.b16 %v453
        %v646 = vunpack.c.l.b16 %v454
        %v647 = vunpack.c.l.b16 %v455
        %v648 = vunpack.c.l.b16 %v456
        %v649 = vunpack.c.l.b16 %v457
        %v650 = vunpack.c.l.b16 %v458
        %v651 = vunpack.c.l.b16 %v459
        %v652 = vunpack.c.l.b16 %v460
        %v653 = vunpack.c.l.b16 %v461
        %v654 = vpack.c.b16 %v559, %v558
        %v655 = vpack.c.b16 %v561, %v560
        %v656 = vpack.c.b16 %v563, %v562
        %v657 = vpack.c.b16 %v565, %v564
        %v658 = vpack.c.b16 %v567, %v566
        %v659 = vpack.c.b16 %v569, %v568
        %v660 = vpack.c.b16 %v571, %v570
        %v661 = vpack.c.b16 %v573, %v572
        %v662 = vpack.c.b16 %v575, %v574
        %v663 = vpack.c.b16 %v577, %v576
        %v664 = vpack.c.b16 %v579, %v578
        %v665 = vpack.c.b16 %v581, %v580
        %v666 = vpack.c.b16 %v583, %v582
        %v667 = vpack.c.b16 %v585, %v584
        %v668 = vpack.c.b16 %v587, %v586
        %v669 = vpack.c.b16 %v589, %v588
        %v670 = vpack.c.b16 %v591, %v590
        %v671 = vpack.c.b16 %v593, %v592
        %v672 = vpack.c.b16 %v595, %v594
        %v673 = vpack.c.b16 %v597, %v596
        %v674 = vpack.c.b16 %v599, %v598
        %v675 = vpack.c.b16 %v601, %v600
        %v676 = vpack.c.b16 %v603, %v602
        %v677 = vpack.c.b16 %v605, %v604
        %v678 = vpack.c.b16 %v607, %v606
        %v679 = vpack.c.b16 %v609, %v608
        %v680 = vpack.c.b16 %v611, %v610
        %v681 = vpack.c.b16 %v613, %v612
        %v682 = vpack.c.b16 %v615, %v614
        %v683 = vpack.c.b16 %v617, %v616
        %v684 = vpack.c.b16 %v619, %v618
        %v685 = vpack.c.b16 %v621, %v620
        %v686 = vpack.c.b16 %v623, %v622
        %v687 = vpack.c.b16 %v625, %v624
        %v688 = vpack.c.b16 %v627, %v626
        %v689 = vpack.c.b16 %v629, %v628
        %v690 = vpack.c.b16 %v631, %v630
        %v691 = vpack.c.b16 %v633, %v632
        %v692 = vpack.c.b16 %v635, %v634
        %v693 = vpack.c.b16 %v637, %v636
        %v694 = vpack.c.b16 %v639, %v638
        %v695 = vpack.c.b16 %v641, %v640
        %v696 = vpack.c.b16 %v643, %v642
        %v697 = vpack.c.b16 %v645, %v644
        %v698 = vpack.c.b16 %v647, %v646
        %v699 = vpack.c.b16 %v649, %v648
        %v700 = vpack.c.b16 %v651, %v650
        %v701 = vpack.c.b16 %v653, %v652
        %750 = vmatprep.subr.bf16.mxu0 0
        %751 = vmatpush1.bf16.msra.mxu0 %v654
        %752 = vmatprep.subr.bf16.mxu0 0
        %753 = vmatpush1.bf16.msra.mxu0 %v655
        %754 = vmatprep.subr.bf16.mxu0 0
        %755 = vmatpush1.bf16.msra.mxu0 %v656
        %756 = vmatprep.subr.bf16.mxu0 0
        %757 = vmatpush1.bf16.msra.mxu0 %v657
        %758 = vmatprep.subr.bf16.mxu0 0
        %759 = vmatpush1.bf16.msra.mxu0 %v658
        %760 = vmatprep.subr.bf16.mxu0 0
        %761 = vmatpush1.bf16.msra.mxu0 %v659
        %762 = vmatprep.subr.bf16.mxu0 0
        %763 = vmatpush1.bf16.msra.mxu0 %v660
        %764 = vmatprep.subr.bf16.mxu0 0
        %765 = vmatpush1.bf16.msra.mxu0 %v661
        %766 = vmatprep.subr.bf16.mxu0 0
        %767 = vmatpush1.bf16.msra.mxu0 %v662
        %768 = vmatprep.subr.bf16.mxu0 0
        %769 = vmatpush1.bf16.msra.mxu0 %v663
        %770 = vmatprep.subr.bf16.mxu0 0
        %771 = vmatpush1.bf16.msra.mxu0 %v664
        %772 = vmatprep.subr.bf16.mxu0 0
        %773 = vmatpush1.bf16.msra.mxu0 %v665
        %774 = vmatprep.subr.bf16.mxu0 0
        %775 = vmatpush1.bf16.msra.mxu0 %v666
        %776 = vmatprep.subr.bf16.mxu0 0
        %777 = vmatpush1.bf16.msra.mxu0 %v667
        %778 = vmatprep.subr.bf16.mxu0 0
        %779 = vmatpush1.bf16.msra.mxu0 %v668
        %780 = vmatprep.subr.bf16.mxu0 0
        %781 = vmatpush1.bf16.msra.mxu0 %v669
        %782 = vmatprep.mubr.bf16.mxu0 %v359
        %783 = vmatmul.mubr.bf16.gmra.mrb[0].mxu0 %v358
        %v784 = vpop.f32.mrb[0].mxu0
        %v785 = vadd.f32 0.0, %v784
        %v786 = vpop.f32.mrb[0].mxu0
        %v787 = vpop.f32.mrb[0].mxu0
        %v788 = vpop.f32.mrb[0].mxu0
        %789 = vdwg.mxu0
        %790 = vmatprep.subr.bf16.mxu0 0
        %791 = vmatpush1.bf16.msra.mxu0 %v670
        %792 = vmatprep.subr.bf16.mxu0 0
        %793 = vmatpush1.bf16.msra.mxu0 %v671
        %794 = vmatprep.subr.bf16.mxu0 0
        %795 = vmatpush1.bf16.msra.mxu0 %v672
        %796 = vmatprep.subr.bf16.mxu0 0
        %797 = vmatpush1.bf16.msra.mxu0 %v673
        %798 = vmatprep.subr.bf16.mxu0 0
        %799 = vmatpush1.bf16.msra.mxu0 %v674
        %800 = vmatprep.subr.bf16.mxu0 0
        %801 = vmatpush1.bf16.msra.mxu0 %v675
        %802 = vmatprep.subr.bf16.mxu0 0
        %803 = vmatpush1.bf16.msra.mxu0 %v676
        %804 = vmatprep.subr.bf16.mxu0 0
        %805 = vmatpush1.bf16.msra.mxu0 %v677
        %806 = vmatprep.subr.bf16.mxu0 0
        %807 = vmatpush1.bf16.msra.mxu0 %v678
        %808 = vmatprep.subr.bf16.mxu0 0
        %809 = vmatpush1.bf16.msra.mxu0 %v679
        %810 = vmatprep.subr.bf16.mxu0 0
        %811 = vmatpush1.bf16.msra.mxu0 %v680
        %812 = vmatprep.subr.bf16.mxu0 0
        %813 = vmatpush1.bf16.msra.mxu0 %v681
        %814 = vmatprep.subr.bf16.mxu0 0
        %815 = vmatpush1.bf16.msra.mxu0 %v682
        %816 = vmatprep.subr.bf16.mxu0 0
        %817 = vmatpush1.bf16.msra.mxu0 %v683
        %818 = vmatprep.subr.bf16.mxu0 0
        %819 = vmatpush1.bf16.msra.mxu0 %v684
        %820 = vmatprep.subr.bf16.mxu0 0
        %821 = vmatpush1.bf16.msra.mxu0 %v685
        %822 = vmatprep.mubr.bf16.mxu0 %v361
        %823 = vmatmul.mubr.bf16.gmra.mrb[0].mxu0 %v360
        %v824 = vpop.f32.mrb[0].mxu0
        %v825 = vadd.f32 %v785, %v824
        %v826 = vpop.f32.mrb[0].mxu0
        %v827 = vpop.f32.mrb[0].mxu0
        %v828 = vpop.f32.mrb[0].mxu0
        %829 = vdwg.mxu0
        %830 = vmatprep.subr.bf16.mxu0 0
        %831 = vmatpush1.bf16.msra.mxu0 %v686
        %832 = vmatprep.subr.bf16.mxu0 0
        %833 = vmatpush1.bf16.msra.mxu0 %v687
        %834 = vmatprep.subr.bf16.mxu0 0
        %835 = vmatpush1.bf16.msra.mxu0 %v688
        %836 = vmatprep.subr.bf16.mxu0 0
        %837 = vmatpush1.bf16.msra.mxu0 %v689
        %838 = vmatprep.subr.bf16.mxu0 0
        %839 = vmatpush1.bf16.msra.mxu0 %v690
        %840 = vmatprep.subr.bf16.mxu0 0
        %841 = vmatpush1.bf16.msra.mxu0 %v691
        %842 = vmatprep.subr.bf16.mxu0 0
        %843 = vmatpush1.bf16.msra.mxu0 %v692
        %844 = vmatprep.subr.bf16.mxu0 0
        %845 = vmatpush1.bf16.msra.mxu0 %v693
        %846 = vmatprep.subr.bf16.mxu0 0
        %847 = vmatpush1.bf16.msra.mxu0 %v694
        %848 = vmatprep.subr.bf16.mxu0 0
        %849 = vmatpush1.bf16.msra.mxu0 %v695
        %850 = vmatprep.subr.bf16.mxu0 0
        %851 = vmatpush1.bf16.msra.mxu0 %v696
        %852 = vmatprep.subr.bf16.mxu0 0
        %853 = vmatpush1.bf16.msra.mxu0 %v697
        %854 = vmatprep.subr.bf16.mxu0 0
        %855 = vmatpush1.bf16.msra.mxu0 %v698
        %856 = vmatprep.subr.bf16.mxu0 0
        %857 = vmatpush1.bf16.msra.mxu0 %v699
        %858 = vmatprep.subr.bf16.mxu0 0
        %859 = vmatpush1.bf16.msra.mxu0 %v700
        %860 = vmatprep.subr.bf16.mxu0 0
        %861 = vmatpush1.bf16.msra.mxu0 %v701
        %862 = vmatprep.mubr.bf16.mxu0 %v363
        %863 = vmatmul.mubr.bf16.gmra.mrb[0].mxu0 %v362
        %v864 = vpop.f32.mrb[0].mxu0
        %v865 = vadd.f32 %v825, %v864
        %v866 = vpop.f32.mrb[0].mxu0
        %v867 = vpop.f32.mrb[0].mxu0
        %v868 = vpop.f32.mrb[0].mxu0
        %869 = vdwg.mxu0
        %v870 = vld [vmem:[#allocation8] sm:$0xf]
        %v871 = vld [vmem:[#allocation8 + $0x4] sm:$0xf]
        %v874 = vunpack.c.l.b16 %v870
        %v875 = vunpack.c.l.b16 %v871
        %v876 = vpack.c.b16 %v875, %v874
        %vm878 = vcmask 130048
        %v880 = vsel %vm878, %v365, 0
        %882 = vmatprep.subr.bf16.mxu0 0
        %883 = vmatpush1.bf16.msra.mxu0 %v876
        %884 = vmatprep.subr.bf16.mxu0 0
        %885 = vmatpush1.bf16.msra.mxu0 0
        %886 = vmatprep.subr.bf16.mxu0 0
        %887 = vmatpush1.bf16.msra.mxu0 0
        %888 = vmatprep.subr.bf16.mxu0 0
        %889 = vmatpush1.bf16.msra.mxu0 0
        %890 = vmatprep.subr.bf16.mxu0 0
        %891 = vmatpush1.bf16.msra.mxu0 0
        %892 = vmatprep.subr.bf16.mxu0 0
        %893 = vmatpush1.bf16.msra.mxu0 0
        %894 = vmatprep.subr.bf16.mxu0 0
        %895 = vmatpush1.bf16.msra.mxu0 0
        %896 = vmatprep.subr.bf16.mxu0 0
        %897 = vmatpush1.bf16.msra.mxu0 0
        %898 = vmatprep.subr.bf16.mxu0 0
        %899 = vmatpush1.bf16.msra.mxu0 0
        %900 = vmatprep.subr.bf16.mxu0 0
        %901 = vmatpush1.bf16.msra.mxu0 0
        %902 = vmatprep.subr.bf16.mxu0 0
        %903 = vmatpush1.bf16.msra.mxu0 0
        %904 = vmatprep.subr.bf16.mxu0 0
        %905 = vmatpush1.bf16.msra.mxu0 0
        %906 = vmatprep.subr.bf16.mxu0 0
        %907 = vmatpush1.bf16.msra.mxu0 0
        %908 = vmatprep.subr.bf16.mxu0 0
        %909 = vmatpush1.bf16.msra.mxu0 0
        %910 = vmatprep.subr.bf16.mxu0 0
        %911 = vmatpush1.bf16.msra.mxu0 0
        %912 = vmatprep.subr.bf16.mxu0 0
        %913 = vmatpush1.bf16.msra.mxu0 0
        %914 = vmatprep.mubr.bf16.mxu0 0
        %915 = vmatmul.mubr.bf16.gmra.mrb[0].mxu0 %v880
        %v916 = vpop.f32.mrb[0].mxu0
        %v917 = vadd.f32 0.0, %v916
        %v918 = vpop.f32.mrb[0].mxu0
        %v919 = vpop.f32.mrb[0].mxu0
        %v920 = vpop.f32.mrb[0].mxu0
        %921 = vdwg.mxu0
        %v922 = vpack.c.bf16 %v865, %v865
        %923 = vst [vmem:[%s337] sm:$0xf] %v922
        %v924 = vpack.c.bf16 %v917, %v917
        %925 = vst [vmem:[%s344] sm:$0xf] %v924
        %v926 = vmul.f32 %v865, %v865
        %927 = vadd.xlane.f32.xlu0 %v926
        %v928 = vpop.xlane.xlu0 %927
        %v929 = vrot.slane %v928, 4
        %v930 = vadd.f32 %v928, %v929
        %v931 = vrot.slane %v930, 2
        %v932 = vadd.f32 %v930, %v931
        %v933 = vrot.slane %v932, 1
        %v934 = vadd.f32 %v932, %v933
        %vm935 = vcmask 0
        %936 = vst.msk [vmem:[%s350] sm:$0x1] %vm935, %v934
        %s937 = sand.u32 %s133, 1
        %s938 = scalar_lea.sflag [#allocation4], %s937
        %s939 = sand.u32 %s133, 1
        %s940 = smul.addr %s939, 4
        %s941 = scalar_lea.vmem [#allocation10], %s940
        %s942 = sand.u32 %s31, 1
        %s943 = scalar_lea.sflag [#allocation12], %s942
        %s944 = sand.u32 %s159, 1
        %s945 = smul.addr %s944, 4
        %s946 = scalar_lea.vmem [#allocation11], %s945
        %s947 = sand.u32 %s31, 1
        %s948 = scalar_lea.sflag [#allocation12], %s947
        %s949 = sand.u32 %s185, 1
        %s950 = scalar_lea.vmem [#allocation13], %s949
        // Predicated region
        $region53: #{tpu_custom_call.1} parent=35 // pred_check
          %p951 = pneg %p143
        $region54: #{tpu_custom_call.1} parent=35 // pred_check_branch
          %953 = sbr.rel (%p951) target = $region56
        $region55: #{tpu_custom_call.1} parent=35 // pred_region
          %s955 = ssub.s32 64, 64
          %956 = vsyncadd %s938, %s955
          %s957 = smul.addr %s31, 64
          %s958 = scalar_lea.hbm %s4, %s957
          %s960 = sshll.u32 %s941, 4
          %s961 = int_to_ptr.vmem [resolvable:$true] %s960
          %963 = dma.vmem_to_hbm [thread:$0]  %s961, 64, %s958, %s938
        $region56: #{tpu_custom_call.1} parent=35 // pred_fallthru
          _
        // Predicated region
        $region57: #{tpu_custom_call.1} parent=35 // pred_check
          %p964 = pneg %p169
        $region58: #{tpu_custom_call.1} parent=35 // pred_check_branch
          %966 = sbr.rel (%p964) target = $region60
        $region59: #{tpu_custom_call.1} parent=35 // pred_region
          %s968 = ssub.s32 64, 64
          %969 = vsyncadd %s943, %s968
          %s970 = smul.addr %s31, 64
          %s971 = scalar_lea.hbm %s5, %s970
          %s973 = sshll.u32 %s946, 4
          %s974 = int_to_ptr.vmem [resolvable:$true] %s973
          %976 = dma.vmem_to_hbm [thread:$0]  %s974, 64, %s971, %s943
        $region60: #{tpu_custom_call.1} parent=35 // pred_fallthru
          _
        // Predicated region
        $region61: #{tpu_custom_call.1} parent=35 // pred_check
          %p977 = pneg %p195
        $region62: #{tpu_custom_call.1} parent=35 // pred_check_branch
          %979 = sbr.rel (%p977) target = $region64
        $region63: #{tpu_custom_call.1} parent=35 // pred_region
          %s981 = ssub.s32 16, 16
          %982 = vsyncadd %s948, %s981
          %s983 = smul.addr %s31, 16
          %s984 = scalar_lea.hbm %s6, %s983
          %s986 = sshll.u32 %s950, 4
          %s987 = int_to_ptr.vmem [resolvable:$true] %s986
          %989 = dma.vmem_to_hbm [thread:$0]  %s987, 16, %s984, %s948
        $region64: #{tpu_custom_call.1} parent=35 // pred_fallthru
          _
      $region36: #{tpu_custom_call.1} parent=5 // pred_fallthru
        _
      %p990 = scmp.le.s32.totalorder 2, %s26
      // Predicated region
      $region65: #{tpu_custom_call.1} parent=5 // pred_check
        %p991 = pneg %p990
      $region66: #{tpu_custom_call.1} parent=5 // pred_check_branch
        %993 = sbr.rel (%p991) target = $region68
      $region67: #{tpu_custom_call.1} parent=5 // pred_region
        %s994 = ssub.s32 %s26, 2
        // Predicated region
        $region69: #{tpu_custom_call.1} parent=67 // pred_check
          %p995 = pneg %p149
        $region70: #{tpu_custom_call.1} parent=67 // pred_check_branch
          %997 = sbr.rel (%p995) target = $region72
        $region71: #{tpu_custom_call.1} parent=67 // pred_region
          %s998 = sand.u32 %s134, 1
          %s999 = scalar_lea.sflag [#allocation4], %s998
          %s1000 = sand.u32 %s134, 1
          %s1001 = smul.addr %s1000, 4
          %s1002 = scalar_lea.vmem [#allocation10], %s1001
          %1003 = dma.done %s999, 64
        $region72: #{tpu_custom_call.1} parent=67 // pred_fallthru
          _
        // Predicated region
        $region73: #{tpu_custom_call.1} parent=67 // pred_check
          %p1004 = pneg %p175
        $region74: #{tpu_custom_call.1} parent=67 // pred_check_branch
          %1006 = sbr.rel (%p1004) target = $region76
        $region75: #{tpu_custom_call.1} parent=67 // pred_region
          %s1007 = sand.u32 %s32, 1
          %s1008 = scalar_lea.sflag [#allocation12], %s1007
          %s1009 = sand.u32 %s160, 1
          %s1010 = smul.addr %s1009, 4
          %s1011 = scalar_lea.vmem [#allocation11], %s1010
          %1012 = dma.done %s1008, 64
        $region76: #{tpu_custom_call.1} parent=67 // pred_fallthru
          _
        // Predicated region
        $region77: #{tpu_custom_call.1} parent=67 // pred_check
          %p1013 = pneg %p201
        $region78: #{tpu_custom_call.1} parent=67 // pred_check_branch
          %1015 = sbr.rel (%p1013) target = $region80
        $region79: #{tpu_custom_call.1} parent=67 // pred_region
          %s1016 = sand.u32 %s32, 1
          %s1017 = scalar_lea.sflag [#allocation12], %s1016
          %s1018 = sand.u32 %s186, 1
          %s1019 = scalar_lea.vmem [#allocation13], %s1018
          %1020 = dma.done %s1017, 16
        $region80: #{tpu_custom_call.1} parent=67 // pred_fallthru
          _
      $region68: #{tpu_custom_call.1} parent=5 // pred_fallthru
        _
    $region6: #{tpu_custom_call.1} parent=1 // loop_footer
      %s30 = sadd.s32 1, %s26
    $region7: #{tpu_custom_call.1} parent=1 // loop_footer_branch
      %25 = sbr.rel target = $region3
    $region8: #{tpu_custom_call.1} parent=1 // loop_exit
      _
    %1021 = vsyncpa [#allocation3], 1
    %s1022 = scalar_lea.sflag [#allocation3], 1
    %1023 = vsyncpa %s1022, 1
    %1024 = vsyncpa [#allocation6], 1
    %s1025 = scalar_lea.sflag [#allocation6], 1
    %1026 = vsyncpa %s1025, 1
    %1027 = vsyncpa [#allocation9], 1
    %1028 = vsyncpa [#allocation4], 1
    %s1029 = scalar_lea.sflag [#allocation4], 1
    %1030 = vsyncpa %s1029, 1
    %1031 = vsyncpa [#allocation12], 1
    %s1032 = scalar_lea.sflag [#allocation12], 1
    %1033 = vsyncpa %s1032, 1

</llo_original>
